<compile_context>
chip_gen: v5e
topology: v5e:2x2
jax: 0.10.0
libtpu: 0.0.40
codegen_flags: <defaults>
</compile_context>

<pallas_src>
import jax
import jax.numpy as jnp
from jax.experimental import pallas as pl
from jax.experimental.pallas import tpu as pltpu

HID_DIM = 512
N_HEADS = 8


def _init_unused_attention_params(key, hid_dim=HID_DIM):
    """Parameters the PyTorch __init__ creates (fc_q/fc_k/fc_v/fc_o and the
    multiplicative-attention weight).  They are NOT used in forward, exactly
    as in the reference module."""
    ks = jax.random.split(key, 5)
    scale = 1.0 / jnp.sqrt(hid_dim)
    return {
        "fc_q_w": jax.random.uniform(ks[0], (hid_dim, hid_dim), jnp.float32, -scale, scale),
        "fc_k_w": jax.random.uniform(ks[1], (hid_dim, hid_dim), jnp.float32, -scale, scale),
        "fc_v_w": jax.random.uniform(ks[2], (hid_dim, hid_dim), jnp.float32, -scale, scale),
        "fc_o_w": jax.random.uniform(ks[3], (hid_dim, hid_dim), jnp.float32, -scale, scale),
        "mult_attn_w": jax.random.uniform(
            ks[4], (hid_dim // N_HEADS, hid_dim // N_HEADS), jnp.float32, -scale, scale
        ),
    }


def _dma_copy_kernel(x_hbm_ref, o_hbm_ref, sem):
    # TranslationModel.forward: return x.
    # One whole-array HBM->HBM DMA; no VMEM staging, no grid steps.
    cp = pltpu.make_async_copy(x_hbm_ref, o_hbm_ref, sem)
    cp.start()
    cp.wait()


def _pallas_identity_dma(x):
    """Identity realized as a single HBM->HBM DMA inside a Pallas kernel."""
    nbytes = x.size * x.dtype.itemsize
    return pl.pallas_call(
        _dma_copy_kernel,
        out_shape=jax.ShapeDtypeStruct(x.shape, x.dtype),
        in_specs=[pl.BlockSpec(memory_space=pl.ANY)],
        out_specs=pl.BlockSpec(memory_space=pl.ANY),
        scratch_shapes=[pltpu.SemaphoreType.DMA(())],
        cost_estimate=pl.CostEstimate(
            flops=0, transcendentals=0, bytes_accessed=2 * nbytes
        ),
    )(x)


def translation_model_forward(x, *, use_pallas=True):
    """Pallas implementation of TranslationModel.forward (identity).

    use_pallas=False is the truly optimal path (return x, zero HBM traffic);
    use_pallas=True exercises a real Pallas kernel: a single HBM->HBM DMA
    that runs at the HBM roofline with no VMEM round trip or per-step
    pipeline overhead.
    """
    if not use_pallas:
        return x
    if x.size == 0:
        # Degenerate empty tensor: nothing to copy.
        return x
    return _pallas_identity_dma(x)


if __name__ == "__main__":
    key = jax.random.PRNGKey(0)
    k_params, k_x = jax.random.split(key)

    # Parameters exist (as in the PyTorch __init__) but are unused by forward.
    _unused_params = _init_unused_attention_params(k_params)

    # Small input consistent with the module context: (batch=2, seq=8, hid_dim=512).
    x = jax.random.normal(k_x, (2, 8, HID_DIM), dtype=jnp.float32)

    y = translation_model_forward(x)
    y = jax.block_until_ready(y)

    assert y.shape == x.shape and y.dtype == x.dtype
    assert bool(jnp.all(y == x))
    print("KERNEL_OK")
</pallas_src>

<mosaic_0001>
module attributes {stable_mosaic.version = 11 : i64} {
  func.func @_dma_copy_kernel(%arg0: memref<2x8x512xf32, #tpu.memory_space<any>>, %arg1: memref<2x8x512xf32, #tpu.memory_space<any>>, %arg2: memref<!tpu.dma_semaphore, #tpu.memory_space<semaphore_mem>>) attributes {dimension_semantics = [], scalar_prefetch = 0 : i64, scratch_operands = 1 : i64, tpu.core_type = #tpu.core_type<tc>} {
    tpu.enqueue_dma source(%arg0 : memref<2x8x512xf32, #tpu.memory_space<any>>) target(%arg1 : memref<2x8x512xf32, #tpu.memory_space<any>>) target_semaphore(%arg2 : memref<!tpu.dma_semaphore, #tpu.memory_space<semaphore_mem>>)
    tpu.wait_dma2 semaphore(%arg2 : memref<!tpu.dma_semaphore, #tpu.memory_space<semaphore_mem>>) src(%arg0 : memref<2x8x512xf32, #tpu.memory_space<any>>) dst(%arg1 : memref<2x8x512xf32, #tpu.memory_space<any>>)
    return
  }
}

</mosaic_0001>

<llo_original>
// kernel: tpu_custom_call.1
$region0: #{tpu_custom_call.1}
  #allocation0 [shape = 'u32[]', space=smem, size = 0x4, offset = 0x4, fixed_abs, tag = 'smem constant byte address 0x4 - core index']
  #allocation1 [shape = 'u32[72,128]{1,0:T(1,128)}', space=vmem, size = 0x9000, scoped, tag = 'internal scratch']
  #allocation2 [shape = 's32[1]{0}', space=sflag, size = 0x4, scoped, tag = 'scratch operand']
  #allocation3 [shape = 's32[]', space=sflag, size = 0x4, offset = 0, fixed_abs, tag = 'sflag constant byte address 0x0 - dummy sync flag']
  #allocation4 [shape = 'u32[0]{0}', space=smem, size = 0, offset = 0, fixed_abs, tag = 'smem constant byte address 0x0 - null']
  %s0 = inlined_call_operand.hbm [shape: f32[2,8,512], index: 0, kind: input, shape index: {}]
  %s1 = inlined_call_operand.hbm [shape: f32[2,8,512], index: 1, kind: output, shape index: {}]
  %s2 = sld [smem:[#allocation0]]
  $region2: #{tpu_custom_call.1} parent=0
    _
  %s4 = ssub.s32 1, %s2
  %s5 = scalar_select 0, %s4, %s2
  %s7 = sshll.u32 1, 14
  %s8 = sxor.u32 4294967295, %s7
  %s10 = sshll.u32 %s0, 4
  %s11 = int_to_ptr.hbm [resolvable:$true] %s10
  %s12 = sshll.u32 %s1, 4
  %s13 = int_to_ptr.hbm [resolvable:$true] %s12
  %16 = dma.general %s11, 1024, %s13, [#allocation2], [#allocation3], [#allocation4], 0, 0
  %s17 = smul.u32 8, 2
  %s18 = smul.u32 %s17, 1
  %s19 = smul.u32 %s18, 4
  %s20 = sshll.u32 %s19, 4
  %21 = dma.done [#allocation2], %s20
  %22 = vsyncmov [#allocation2]
  %s23 = vpop.sfrf %22
  %p24 = scmp.eq.s32.totalorder %s23, 0
  %p25 = pneg %p24
  %27 = shalt.err (%p25)

</llo_original>
